<compile_context>
chip_gen: v7x
topology: tpu7x:2x2x1
jax: 0.10.0
libtpu: 0.0.40
codegen_flags: <defaults>
</compile_context>

<pallas_src>
import jax
import jax.numpy as jnp
from jax.experimental import pallas as pl
from jax.experimental.pallas import tpu as pltpu

LANE = 128      # TPU lane width  (last-dim tiling unit)
SUBLANE = 8     # TPU sublane width (second-to-last dim tiling unit)


def _round_up(x, m):
    return ((x + m - 1) // m) * m


# ----------------------------- Pallas kernel ------------------------------- #

def fused_gcn_kernel(a_ref, x_ref,
                     w1_ref, b1_ref, w2_ref, b2_ref, w3_ref, b3_ref,
                     wf_ref, bf_ref, o_ref):
    """Whole GCN forward in one kernel; intermediates never leave VMEM."""
    a = a_ref[...]                                     # [Np, Np] normalized adjacency

    # conv1: tanh(A @ (X @ W1) + b1)
    xw = jnp.dot(x_ref[...], w1_ref[...], preferred_element_type=jnp.float32)
    h = jnp.tanh(jnp.dot(a, xw, preferred_element_type=jnp.float32) + b1_ref[...])

    # conv2: tanh(A @ (H @ W2) + b2)
    xw = jnp.dot(h, w2_ref[...], preferred_element_type=jnp.float32)
    h = jnp.tanh(jnp.dot(a, xw, preferred_element_type=jnp.float32) + b2_ref[...])

    # conv3: tanh(A @ (H @ W3) + b3)
    xw = jnp.dot(h, w3_ref[...], preferred_element_type=jnp.float32)
    h = jnp.tanh(jnp.dot(a, xw, preferred_element_type=jnp.float32) + b3_ref[...])

    # fc head: H @ Wf + bf   (lane-dense padded output, sliced in the wrapper)
    o_ref[...] = (jnp.dot(h, wf_ref[...], preferred_element_type=jnp.float32)
                  + bf_ref[...])


# ------------------------------ Pallas wrapper ------------------------------ #

def _pad2d(x, rows, cols):
    r, c = x.shape
    return jnp.pad(x, ((0, rows - r), (0, cols - c)))


@jax.jit
def gcn_forward(a_hat, x, params):
    n, _ = x.shape
    num_classes = params["wf"].shape[1]
    n_p = _round_up(n, SUBLANE)      # robust if the real graph N isn't aligned

    # Zero-pad everything to lane-dense 128-wide slabs (exact for this net).
    a_p = _pad2d(a_hat, n_p, n_p)
    x_p = _pad2d(x, n_p, LANE)
    w1 = _pad2d(params["w1"], LANE, LANE)
    w2 = _pad2d(params["w2"], LANE, LANE)
    w3 = _pad2d(params["w3"], LANE, LANE)
    wf = _pad2d(params["wf"], LANE, LANE)
    b1 = _pad2d(params["b1"], 1, LANE)
    b2 = _pad2d(params["b2"], 1, LANE)
    b3 = _pad2d(params["b3"], 1, LANE)
    bf = _pad2d(params["bf"], 1, LANE)

    def full(shape):
        return pl.BlockSpec(shape, lambda i: (0, 0))

    out_p = pl.pallas_call(
        fused_gcn_kernel,
        out_shape=jax.ShapeDtypeStruct((n_p, LANE), jnp.float32),
        grid=(1,),
        in_specs=[
            full((n_p, n_p)),                       # A_hat (resident, one DMA)
            full((n_p, LANE)),                      # X (padded to 128 lanes)
            full((LANE, LANE)), full((1, LANE)),    # W1, b1
            full((LANE, LANE)), full((1, LANE)),    # W2, b2
            full((LANE, LANE)), full((1, LANE)),    # W3, b3
            full((LANE, LANE)), full((1, LANE)),    # Wf, bf
        ],
        out_specs=full((n_p, LANE)),
        compiler_params=pltpu.CompilerParams(
            dimension_semantics=("arbitrary",)),
    )(a_p, x_p, w1, b1, w2, b2, w3, b3, wf, bf)

    return out_p[:n, :num_classes]


# --------------------------------- setup ----------------------------------- #

def glorot(key, shape):
    fan_in, fan_out = shape
    lim = (6.0 / (fan_in + fan_out)) ** 0.5
    return jax.random.uniform(key, shape, jnp.float32, -lim, lim)


def make_params(key, in_feats, h1, h2, h3, num_classes):
    ks = jax.random.split(key, 4)
    return {
        "w1": glorot(ks[0], (in_feats, h1)), "b1": jnp.zeros((1, h1), jnp.float32),
        "w2": glorot(ks[1], (h1, h2)),       "b2": jnp.zeros((1, h2), jnp.float32),
        "w3": glorot(ks[2], (h2, h3)),       "b3": jnp.zeros((1, h3), jnp.float32),
        "wf": glorot(ks[3], (h3, num_classes)),
        "bf": jnp.zeros((1, num_classes), jnp.float32),
    }


def make_graph(key, n):
    # synthetic Erdos-Renyi graph standing in for shanghai_graph.bin
    # TODO(synk): real graph would be loaded with dgl.load_graphs; built in-script here.
    a = (jax.random.uniform(key, (n, n)) < 0.05).astype(jnp.float32)
    a = jnp.maximum(a, a.T)                             # symmetrize
    a = jnp.maximum(a, jnp.eye(n, dtype=jnp.float32))   # add self-loops
    deg = a.sum(axis=1)
    d_inv_sqrt = 1.0 / jnp.sqrt(deg)
    return a * d_inv_sqrt[:, None] * d_inv_sqrt[None, :]  # D^-1/2 A D^-1/2


def reference_forward(a_hat, x, p):
    h = jnp.tanh(a_hat @ (x @ p["w1"]) + p["b1"])
    h = jnp.tanh(a_hat @ (h @ p["w2"]) + p["b2"])
    h = jnp.tanh(a_hat @ (h @ p["w3"]) + p["b3"])
    return h @ p["wf"] + p["bf"]


if __name__ == "__main__":
    N = 128                 # number of graph nodes
    IN_FEATS = 16
    H1, H2, H3 = 64, 32, 32
    NUM_CLASSES = 8

    root = jax.random.PRNGKey(0)
    k_graph, k_feat, k_param = jax.random.split(root, 3)

    a_hat = make_graph(k_graph, N)
    x = jax.random.normal(k_feat, (N, IN_FEATS), jnp.float32)
    params = make_params(k_param, IN_FEATS, H1, H2, H3, NUM_CLASSES)

    out = gcn_forward(a_hat, x, params)
    out = jax.block_until_ready(out)

    ref = reference_forward(a_hat, x, params)
    assert out.shape == (N, NUM_CLASSES)
    assert jnp.allclose(out, ref, atol=1e-4, rtol=1e-4)

    print("KERNEL_OK")
</pallas_src>

<mosaic_0001>
module attributes {stable_mosaic.version = 11 : i64} {
  func.func @fused_gcn_kernel(%arg0: i32, %arg1: memref<128x128xf32, #tpu.memory_space<vmem>>, %arg2: memref<128x128xf32, #tpu.memory_space<vmem>>, %arg3: memref<128x128xf32, #tpu.memory_space<vmem>>, %arg4: memref<1x128xf32, #tpu.memory_space<vmem>>, %arg5: memref<128x128xf32, #tpu.memory_space<vmem>>, %arg6: memref<1x128xf32, #tpu.memory_space<vmem>>, %arg7: memref<128x128xf32, #tpu.memory_space<vmem>>, %arg8: memref<1x128xf32, #tpu.memory_space<vmem>>, %arg9: memref<128x128xf32, #tpu.memory_space<vmem>>, %arg10: memref<1x128xf32, #tpu.memory_space<vmem>>, %arg11: memref<128x128xf32, #tpu.memory_space<vmem>>) attributes {dimension_semantics = [#tpu.dimension_semantics<arbitrary>], iteration_bounds = array<i64: 1>, scalar_prefetch = 0 : i64, scratch_operands = 0 : i64, tpu.core_type = #tpu.core_type<tc>, window_params = [{pipeline_mode = #tpu.pipeline_mode<synchronous>, transform_indices = @transform_0, window_bounds = array<i64: 128, 128>}, {pipeline_mode = #tpu.pipeline_mode<synchronous>, transform_indices = @transform_1, window_bounds = array<i64: 128, 128>}, {pipeline_mode = #tpu.pipeline_mode<synchronous>, transform_indices = @transform_2, window_bounds = array<i64: 128, 128>}, {pipeline_mode = #tpu.pipeline_mode<synchronous>, transform_indices = @transform_3, window_bounds = array<i64: 1, 128>}, {pipeline_mode = #tpu.pipeline_mode<synchronous>, transform_indices = @transform_4, window_bounds = array<i64: 128, 128>}, {pipeline_mode = #tpu.pipeline_mode<synchronous>, transform_indices = @transform_5, window_bounds = array<i64: 1, 128>}, {pipeline_mode = #tpu.pipeline_mode<synchronous>, transform_indices = @transform_6, window_bounds = array<i64: 128, 128>}, {pipeline_mode = #tpu.pipeline_mode<synchronous>, transform_indices = @transform_7, window_bounds = array<i64: 1, 128>}, {pipeline_mode = #tpu.pipeline_mode<synchronous>, transform_indices = @transform_8, window_bounds = array<i64: 128, 128>}, {pipeline_mode = #tpu.pipeline_mode<synchronous>, transform_indices = @transform_9, window_bounds = array<i64: 1, 128>}, {pipeline_mode = #tpu.pipeline_mode<synchronous>, transform_indices = @transform_10, window_bounds = array<i64: 128, 128>}]} {
    %c0 = arith.constant 0 : index
    %c0_0 = arith.constant 0 : index
    %0 = vector.load %arg1[%c0, %c0_0] : memref<128x128xf32, #tpu.memory_space<vmem>>, vector<128x128xf32>
    %c0_1 = arith.constant 0 : index
    %c0_2 = arith.constant 0 : index
    %1 = vector.load %arg2[%c0_1, %c0_2] : memref<128x128xf32, #tpu.memory_space<vmem>>, vector<128x128xf32>
    %c0_3 = arith.constant 0 : index
    %c0_4 = arith.constant 0 : index
    %2 = vector.load %arg3[%c0_3, %c0_4] : memref<128x128xf32, #tpu.memory_space<vmem>>, vector<128x128xf32>
    %cst = arith.constant dense<0.000000e+00> : vector<128x128xf32>
    %3 = tpu.matmul %1, %2, %cst {dimension_numbers = #tpu.dot_dimension_numbers<[1], [0], [0], [1], [0, 0, 1, 1], [], []>} : vector<128x128xf32>, vector<128x128xf32>, vector<128x128xf32> -> vector<128x128xf32>
    %cst_5 = arith.constant dense<0.000000e+00> : vector<128x128xf32>
    %4 = tpu.matmul %0, %3, %cst_5 {dimension_numbers = #tpu.dot_dimension_numbers<[1], [0], [0], [1], [0, 0, 1, 1], [], []>} : vector<128x128xf32>, vector<128x128xf32>, vector<128x128xf32> -> vector<128x128xf32>
    %c0_6 = arith.constant 0 : index
    %c0_7 = arith.constant 0 : index
    %5 = vector.load %arg4[%c0_6, %c0_7] : memref<1x128xf32, #tpu.memory_space<vmem>>, vector<1x128xf32>
    %6 = vector.broadcast %5 : vector<1x128xf32> to vector<128x128xf32>
    %7 = arith.addf %4, %6 : vector<128x128xf32>
    %8 = math.tanh %7 : vector<128x128xf32>
    %c0_8 = arith.constant 0 : index
    %c0_9 = arith.constant 0 : index
    %9 = vector.load %arg5[%c0_8, %c0_9] : memref<128x128xf32, #tpu.memory_space<vmem>>, vector<128x128xf32>
    %cst_10 = arith.constant dense<0.000000e+00> : vector<128x128xf32>
    %10 = tpu.matmul %8, %9, %cst_10 {dimension_numbers = #tpu.dot_dimension_numbers<[1], [0], [0], [1], [0, 0, 1, 1], [], []>} : vector<128x128xf32>, vector<128x128xf32>, vector<128x128xf32> -> vector<128x128xf32>
    %cst_11 = arith.constant dense<0.000000e+00> : vector<128x128xf32>
    %11 = tpu.matmul %0, %10, %cst_11 {dimension_numbers = #tpu.dot_dimension_numbers<[1], [0], [0], [1], [0, 0, 1, 1], [], []>} : vector<128x128xf32>, vector<128x128xf32>, vector<128x128xf32> -> vector<128x128xf32>
    %c0_12 = arith.constant 0 : index
    %c0_13 = arith.constant 0 : index
    %12 = vector.load %arg6[%c0_12, %c0_13] : memref<1x128xf32, #tpu.memory_space<vmem>>, vector<1x128xf32>
    %13 = vector.broadcast %12 : vector<1x128xf32> to vector<128x128xf32>
    %14 = arith.addf %11, %13 : vector<128x128xf32>
    %15 = math.tanh %14 : vector<128x128xf32>
    %c0_14 = arith.constant 0 : index
    %c0_15 = arith.constant 0 : index
    %16 = vector.load %arg7[%c0_14, %c0_15] : memref<128x128xf32, #tpu.memory_space<vmem>>, vector<128x128xf32>
    %cst_16 = arith.constant dense<0.000000e+00> : vector<128x128xf32>
    %17 = tpu.matmul %15, %16, %cst_16 {dimension_numbers = #tpu.dot_dimension_numbers<[1], [0], [0], [1], [0, 0, 1, 1], [], []>} : vector<128x128xf32>, vector<128x128xf32>, vector<128x128xf32> -> vector<128x128xf32>
    %cst_17 = arith.constant dense<0.000000e+00> : vector<128x128xf32>
    %18 = tpu.matmul %0, %17, %cst_17 {dimension_numbers = #tpu.dot_dimension_numbers<[1], [0], [0], [1], [0, 0, 1, 1], [], []>} : vector<128x128xf32>, vector<128x128xf32>, vector<128x128xf32> -> vector<128x128xf32>
    %c0_18 = arith.constant 0 : index
    %c0_19 = arith.constant 0 : index
    %19 = vector.load %arg8[%c0_18, %c0_19] : memref<1x128xf32, #tpu.memory_space<vmem>>, vector<1x128xf32>
    %20 = vector.broadcast %19 : vector<1x128xf32> to vector<128x128xf32>
    %21 = arith.addf %18, %20 : vector<128x128xf32>
    %22 = math.tanh %21 : vector<128x128xf32>
    %c0_20 = arith.constant 0 : index
    %c0_21 = arith.constant 0 : index
    %23 = vector.load %arg9[%c0_20, %c0_21] : memref<128x128xf32, #tpu.memory_space<vmem>>, vector<128x128xf32>
    %cst_22 = arith.constant dense<0.000000e+00> : vector<128x128xf32>
    %24 = tpu.matmul %22, %23, %cst_22 {dimension_numbers = #tpu.dot_dimension_numbers<[1], [0], [0], [1], [0, 0, 1, 1], [], []>} : vector<128x128xf32>, vector<128x128xf32>, vector<128x128xf32> -> vector<128x128xf32>
    %c0_23 = arith.constant 0 : index
    %c0_24 = arith.constant 0 : index
    %25 = vector.load %arg10[%c0_23, %c0_24] : memref<1x128xf32, #tpu.memory_space<vmem>>, vector<1x128xf32>
    %26 = vector.broadcast %25 : vector<1x128xf32> to vector<128x128xf32>
    %27 = arith.addf %24, %26 : vector<128x128xf32>
    %c0_25 = arith.constant 0 : index
    %c0_26 = arith.constant 0 : index
    %28 = vector.load %arg11[%c0_25, %c0_26] : memref<128x128xf32, #tpu.memory_space<vmem>>, vector<128x128xf32>
    tpu.vector_store %arg11[%c0_25, %c0_26], %27 {strides = array<i32>} : memref<128x128xf32, #tpu.memory_space<vmem>>, vector<128x128xf32>,
    return
  }
  func.func @transform_0(%arg0: i32) -> (i32, i32) {
    %c0_i32 = arith.constant 0 : i32
    %c0_i32_0 = arith.constant 0 : i32
    %c0_i32_1 = arith.constant 0 : i32
    return %c0_i32, %c0_i32_0 : i32, i32
  }
  func.func @transform_1(%arg0: i32) -> (i32, i32) {
    %c0_i32 = arith.constant 0 : i32
    %c0_i32_0 = arith.constant 0 : i32
    %c0_i32_1 = arith.constant 0 : i32
    return %c0_i32, %c0_i32_0 : i32, i32
  }
  func.func @transform_2(%arg0: i32) -> (i32, i32) {
    %c0_i32 = arith.constant 0 : i32
    %c0_i32_0 = arith.constant 0 : i32
    %c0_i32_1 = arith.constant 0 : i32
    return %c0_i32, %c0_i32_0 : i32, i32
  }
  func.func @transform_3(%arg0: i32) -> (i32, i32) {
    %c0_i32 = arith.constant 0 : i32
    %c0_i32_0 = arith.constant 0 : i32
    %c0_i32_1 = arith.constant 0 : i32
    return %c0_i32, %c0_i32_0 : i32, i32
  }
  func.func @transform_4(%arg0: i32) -> (i32, i32) {
    %c0_i32 = arith.constant 0 : i32
    %c0_i32_0 = arith.constant 0 : i32
    %c0_i32_1 = arith.constant 0 : i32
    return %c0_i32, %c0_i32_0 : i32, i32
  }
  func.func @transform_5(%arg0: i32) -> (i32, i32) {
    %c0_i32 = arith.constant 0 : i32
    %c0_i32_0 = arith.constant 0 : i32
    %c0_i32_1 = arith.constant 0 : i32
    return %c0_i32, %c0_i32_0 : i32, i32
  }
  func.func @transform_6(%arg0: i32) -> (i32, i32) {
    %c0_i32 = arith.constant 0 : i32
    %c0_i32_0 = arith.constant 0 : i32
    %c0_i32_1 = arith.constant 0 : i32
    return %c0_i32, %c0_i32_0 : i32, i32
  }
  func.func @transform_7(%arg0: i32) -> (i32, i32) {
    %c0_i32 = arith.constant 0 : i32
    %c0_i32_0 = arith.constant 0 : i32
    %c0_i32_1 = arith.constant 0 : i32
    return %c0_i32, %c0_i32_0 : i32, i32
  }
  func.func @transform_8(%arg0: i32) -> (i32, i32) {
    %c0_i32 = arith.constant 0 : i32
    %c0_i32_0 = arith.constant 0 : i32
    %c0_i32_1 = arith.constant 0 : i32
    return %c0_i32, %c0_i32_0 : i32, i32
  }
  func.func @transform_9(%arg0: i32) -> (i32, i32) {
    %c0_i32 = arith.constant 0 : i32
    %c0_i32_0 = arith.constant 0 : i32
    %c0_i32_1 = arith.constant 0 : i32
    return %c0_i32, %c0_i32_0 : i32, i32
  }
  func.func @transform_10(%arg0: i32) -> (i32, i32) {
    %c0_i32 = arith.constant 0 : i32
    %c0_i32_0 = arith.constant 0 : i32
    %c0_i32_1 = arith.constant 0 : i32
    return %c0_i32, %c0_i32_0 : i32, i32
  }
}

</mosaic_0001>

<llo_original>
// kernel: gcn_forward.1
$region0: #{gcn_forward.1}
  #allocation0 [shape = 'u32[]', space=smem, size = 0x4, offset = 0x4, fixed_abs, tag = 'smem constant byte address 0x4 - core index']
  #allocation1 [shape = 'u32[144,128]{1,0:T(1,128)}', space=vmem, size = 0x12000, scoped, tag = 'internal scratch']
  %s0 = inlined_call_operand.vmem [shape: f32[128,128], index: 0, kind: input, shape index: {}]
  %s1 = inlined_call_operand.vmem [shape: f32[128,128], index: 1, kind: input, shape index: {}]
  %s2 = inlined_call_operand.vmem [shape: f32[128,128], index: 2, kind: input, shape index: {}]
  %s3 = inlined_call_operand.vmem [shape: f32[1,128], index: 3, kind: input, shape index: {}]
  %s4 = inlined_call_operand.vmem [shape: f32[128,128], index: 4, kind: input, shape index: {}]
  %s5 = inlined_call_operand.vmem [shape: f32[1,128], index: 5, kind: input, shape index: {}]
  %s6 = inlined_call_operand.vmem [shape: f32[128,128], index: 6, kind: input, shape index: {}]
  %s7 = inlined_call_operand.vmem [shape: f32[1,128], index: 7, kind: input, shape index: {}]
  %s8 = inlined_call_operand.vmem [shape: f32[128,128], index: 8, kind: input, shape index: {}]
  %s9 = inlined_call_operand.vmem [shape: f32[1,128], index: 9, kind: input, shape index: {}]
  %s10 = inlined_call_operand.vmem [shape: f32[128,128], index: 10, kind: output, shape index: {}]
  %s11 = sld [smem:[#allocation0]]
  $region50: #{gcn_forward.1} parent=0
    _
  %s13 = ssub.s32 1, %s11
  %s14 = scalar_select 0, %s13, %s11
  // Predicated region
  $region2: #{gcn_forward.1} parent=0 // pred_check
    _
  $region3: #{gcn_forward.1} parent=0 // pred_check_branch
    %16 = sbr.rel (0) target = $region5
  $region4: #{gcn_forward.1} parent=0 // pred_region
    _
  $region5: #{gcn_forward.1} parent=0 // pred_fallthru
    _
  // Predicated region
  $region6: #{gcn_forward.1} parent=0 // pred_check
    _
  $region7: #{gcn_forward.1} parent=0 // pred_check_branch
    %18 = sbr.rel (0) target = $region9
  $region8: #{gcn_forward.1} parent=0 // pred_region
    _
  $region9: #{gcn_forward.1} parent=0 // pred_fallthru
    _
  // Predicated region
  $region10: #{gcn_forward.1} parent=0 // pred_check
    _
  $region11: #{gcn_forward.1} parent=0 // pred_check_branch
    %20 = sbr.rel (0) target = $region13
  $region12: #{gcn_forward.1} parent=0 // pred_region
    _
  $region13: #{gcn_forward.1} parent=0 // pred_fallthru
    _
  // Predicated region
  $region14: #{gcn_forward.1} parent=0 // pred_check
    _
  $region15: #{gcn_forward.1} parent=0 // pred_check_branch
    %22 = sbr.rel (0) target = $region17
  $region16: #{gcn_forward.1} parent=0 // pred_region
    _
  $region17: #{gcn_forward.1} parent=0 // pred_fallthru
    _
  // Predicated region
  $region18: #{gcn_forward.1} parent=0 // pred_check
    _
  $region19: #{gcn_forward.1} parent=0 // pred_check_branch
    %24 = sbr.rel (0) target = $region21
  $region20: #{gcn_forward.1} parent=0 // pred_region
    _
  $region21: #{gcn_forward.1} parent=0 // pred_fallthru
    _
  // Predicated region
  $region22: #{gcn_forward.1} parent=0 // pred_check
    _
  $region23: #{gcn_forward.1} parent=0 // pred_check_branch
    %26 = sbr.rel (0) target = $region25
  $region24: #{gcn_forward.1} parent=0 // pred_region
    _
  $region25: #{gcn_forward.1} parent=0 // pred_fallthru
    _
  // Predicated region
  $region26: #{gcn_forward.1} parent=0 // pred_check
    _
  $region27: #{gcn_forward.1} parent=0 // pred_check_branch
    %28 = sbr.rel (0) target = $region29
  $region28: #{gcn_forward.1} parent=0 // pred_region
    _
  $region29: #{gcn_forward.1} parent=0 // pred_fallthru
    _
  // Predicated region
  $region30: #{gcn_forward.1} parent=0 // pred_check
    _
  $region31: #{gcn_forward.1} parent=0 // pred_check_branch
    %30 = sbr.rel (0) target = $region33
  $region32: #{gcn_forward.1} parent=0 // pred_region
    _
  $region33: #{gcn_forward.1} parent=0 // pred_fallthru
    _
  // Predicated region
  $region34: #{gcn_forward.1} parent=0 // pred_check
    _
  $region35: #{gcn_forward.1} parent=0 // pred_check_branch
    %32 = sbr.rel (0) target = $region37
  $region36: #{gcn_forward.1} parent=0 // pred_region
    _
  $region37: #{gcn_forward.1} parent=0 // pred_fallthru
    _
  // Predicated region
  $region38: #{gcn_forward.1} parent=0 // pred_check
    _
  $region39: #{gcn_forward.1} parent=0 // pred_check_branch
    %34 = sbr.rel (0) target = $region41
  $region40: #{gcn_forward.1} parent=0 // pred_region
    _
  $region41: #{gcn_forward.1} parent=0 // pred_fallthru
    _
  %v35 = vld [vmem:[%s0] sm:$0xff]
  %v36 = vld [vmem:[%s0 + $0x8] sm:$0xff]
  %v37 = vld [vmem:[%s0 + $0x10] sm:$0xff]
  %v38 = vld [vmem:[%s0 + $0x18] sm:$0xff]
  %v39 = vld [vmem:[%s0 + $0x20] sm:$0xff]
  %v40 = vld [vmem:[%s0 + $0x28] sm:$0xff]
  %v41 = vld [vmem:[%s0 + $0x30] sm:$0xff]
  %v42 = vld [vmem:[%s0 + $0x38] sm:$0xff]
  %v43 = vld [vmem:[%s0 + $0x40] sm:$0xff]
  %v44 = vld [vmem:[%s0 + $0x48] sm:$0xff]
  %v45 = vld [vmem:[%s0 + $0x50] sm:$0xff]
  %v46 = vld [vmem:[%s0 + $0x58] sm:$0xff]
  %v47 = vld [vmem:[%s0 + $0x60] sm:$0xff]
  %v48 = vld [vmem:[%s0 + $0x68] sm:$0xff]
  %v49 = vld [vmem:[%s0 + $0x70] sm:$0xff]
  %v50 = vld [vmem:[%s0 + $0x78] sm:$0xff]
  %v51 = vld [vmem:[%s1] sm:$0xff]
  %v52 = vld [vmem:[%s1 + $0x8] sm:$0xff]
  %v53 = vld [vmem:[%s1 + $0x10] sm:$0xff]
  %v54 = vld [vmem:[%s1 + $0x18] sm:$0xff]
  %v55 = vld [vmem:[%s1 + $0x20] sm:$0xff]
  %v56 = vld [vmem:[%s1 + $0x28] sm:$0xff]
  %v57 = vld [vmem:[%s1 + $0x30] sm:$0xff]
  %v58 = vld [vmem:[%s1 + $0x38] sm:$0xff]
  %v59 = vld [vmem:[%s1 + $0x40] sm:$0xff]
  %v60 = vld [vmem:[%s1 + $0x48] sm:$0xff]
  %v61 = vld [vmem:[%s1 + $0x50] sm:$0xff]
  %v62 = vld [vmem:[%s1 + $0x58] sm:$0xff]
  %v63 = vld [vmem:[%s1 + $0x60] sm:$0xff]
  %v64 = vld [vmem:[%s1 + $0x68] sm:$0xff]
  %v65 = vld [vmem:[%s1 + $0x70] sm:$0xff]
  %v66 = vld [vmem:[%s1 + $0x78] sm:$0xff]
  %v67 = vld [vmem:[%s2] sm:$0xff]
  %v68 = vld [vmem:[%s2 + $0x8] sm:$0xff]
  %v69 = vld [vmem:[%s2 + $0x10] sm:$0xff]
  %v70 = vld [vmem:[%s2 + $0x18] sm:$0xff]
  %v71 = vld [vmem:[%s2 + $0x20] sm:$0xff]
  %v72 = vld [vmem:[%s2 + $0x28] sm:$0xff]
  %v73 = vld [vmem:[%s2 + $0x30] sm:$0xff]
  %v74 = vld [vmem:[%s2 + $0x38] sm:$0xff]
  %v75 = vld [vmem:[%s2 + $0x40] sm:$0xff]
  %v76 = vld [vmem:[%s2 + $0x48] sm:$0xff]
  %v77 = vld [vmem:[%s2 + $0x50] sm:$0xff]
  %v78 = vld [vmem:[%s2 + $0x58] sm:$0xff]
  %v79 = vld [vmem:[%s2 + $0x60] sm:$0xff]
  %v80 = vld [vmem:[%s2 + $0x68] sm:$0xff]
  %v81 = vld [vmem:[%s2 + $0x70] sm:$0xff]
  %v82 = vld [vmem:[%s2 + $0x78] sm:$0xff]
  %83 = vmatprep.subr.mxu0 0.0
  %84 = vmatpush1.msra.mxu0 %v67
  %85 = vmatprep.subr.mxu0 0.0
  %86 = vmatpush1.msra.mxu0 %v68
  %87 = vmatprep.subr.mxu0 0.0
  %88 = vmatpush1.msra.mxu0 %v69
  %89 = vmatprep.subr.mxu0 0.0
  %90 = vmatpush1.msra.mxu0 %v70
  %91 = vmatprep.subr.mxu0 0.0
  %92 = vmatpush1.msra.mxu0 %v71
  %93 = vmatprep.subr.mxu0 0.0
  %94 = vmatpush1.msra.mxu0 %v72
  %95 = vmatprep.subr.mxu0 0.0
  %96 = vmatpush1.msra.mxu0 %v73
  %97 = vmatprep.subr.mxu0 0.0
  %98 = vmatpush1.msra.mxu0 %v74
  %99 = vmatprep.subr.mxu0 0.0
  %100 = vmatpush1.msra.mxu0 %v75
  %101 = vmatprep.subr.mxu0 0.0
  %102 = vmatpush1.msra.mxu0 %v76
  %103 = vmatprep.subr.mxu0 0.0
  %104 = vmatpush1.msra.mxu0 %v77
  %105 = vmatprep.subr.mxu0 0.0
  %106 = vmatpush1.msra.mxu0 %v78
  %107 = vmatprep.subr.mxu0 0.0
  %108 = vmatpush1.msra.mxu0 %v79
  %109 = vmatprep.subr.mxu0 0.0
  %110 = vmatpush1.msra.mxu0 %v80
  %111 = vmatprep.subr.mxu0 0.0
  %112 = vmatpush1.msra.mxu0 %v81
  %113 = vmatprep.subr.mxu0 0.0
  %114 = vmatpush1.msra.mxu0 %v82
  %115 = vmatprep.subr.mxu0 0.0
  %116 = vmatpush1.msra.mxu0 0.0
  %117 = vmatprep.subr.mxu0 0.0
  %118 = vmatpush1.msra.mxu0 0.0
  %119 = vmatprep.subr.mxu0 0.0
  %120 = vmatpush1.msra.mxu0 0.0
  %121 = vmatprep.subr.mxu0 0.0
  %122 = vmatpush1.msra.mxu0 0.0
  %123 = vmatprep.subr.mxu0 0.0
  %124 = vmatpush1.msra.mxu0 0.0
  %125 = vmatprep.subr.mxu0 0.0
  %126 = vmatpush1.msra.mxu0 0.0
  %127 = vmatprep.subr.mxu0 0.0
  %128 = vmatpush1.msra.mxu0 0.0
  %129 = vmatprep.subr.mxu0 0.0
  %130 = vmatpush1.msra.mxu0 0.0
  %131 = vmatprep.subr.mxu0 0.0
  %132 = vmatpush1.msra.mxu0 0.0
  %133 = vmatprep.subr.mxu0 0.0
  %134 = vmatpush1.msra.mxu0 0.0
  %135 = vmatprep.subr.mxu0 0.0
  %136 = vmatpush1.msra.mxu0 0.0
  %137 = vmatprep.subr.mxu0 0.0
  %138 = vmatpush1.msra.mxu0 0.0
  %139 = vmatprep.subr.mxu0 0.0
  %140 = vmatpush1.msra.mxu0 0.0
  %141 = vmatprep.subr.mxu0 0.0
  %142 = vmatpush1.msra.mxu0 0.0
  %143 = vmatprep.subr.mxu0 0.0
  %144 = vmatpush1.msra.mxu0 0.0
  %145 = vmatprep.subr.mxu0 0.0
  %146 = vmatpush1.msra.mxu0 0.0
  %147 = vmatprep.mubr.f32.mxu0 0.0
  %148 = vmatmul.mubr.f32.gmra.mrb[0].mxu0 %v51
  %v149 = vpop.f32.mrb[0].mxu0
  %v150 = vadd.f32 0.0, %v149
  %v151 = vpop.f32.mrb[0].mxu0
  %152 = vmatprep.mubr.f32.mxu0 0.0
  %153 = vmatmul.mubr.f32.gmra.mrb[0].mxu0 %v52
  %v154 = vpop.f32.mrb[0].mxu0
  %v155 = vadd.f32 0.0, %v154
  %v156 = vpop.f32.mrb[0].mxu0
  %157 = vmatprep.mubr.f32.mxu0 0.0
  %158 = vmatmul.mubr.f32.gmra.mrb[0].mxu0 %v53
  %v159 = vpop.f32.mrb[0].mxu0
  %v160 = vadd.f32 0.0, %v159
  %v161 = vpop.f32.mrb[0].mxu0
  %162 = vmatprep.mubr.f32.mxu0 0.0
  %163 = vmatmul.mubr.f32.gmra.mrb[0].mxu0 %v54
  %v164 = vpop.f32.mrb[0].mxu0
  %v165 = vadd.f32 0.0, %v164
  %v166 = vpop.f32.mrb[0].mxu0
  %167 = vmatprep.mubr.f32.mxu0 0.0
  %168 = vmatmul.mubr.f32.gmra.mrb[0].mxu0 %v55
  %v169 = vpop.f32.mrb[0].mxu0
  %v170 = vadd.f32 0.0, %v169
  %v171 = vpop.f32.mrb[0].mxu0
  %172 = vmatprep.mubr.f32.mxu0 0.0
  %173 = vmatmul.mubr.f32.gmra.mrb[0].mxu0 %v56
  %v174 = vpop.f32.mrb[0].mxu0
  %v175 = vadd.f32 0.0, %v174
  %v176 = vpop.f32.mrb[0].mxu0
  %177 = vmatprep.mubr.f32.mxu0 0.0
  %178 = vmatmul.mubr.f32.gmra.mrb[0].mxu0 %v57
  %v179 = vpop.f32.mrb[0].mxu0
  %v180 = vadd.f32 0.0, %v179
  %v181 = vpop.f32.mrb[0].mxu0
  %182 = vmatprep.mubr.f32.mxu0 0.0
  %183 = vmatmul.mubr.f32.gmra.mrb[0].mxu0 %v58
  %v184 = vpop.f32.mrb[0].mxu0
  %v185 = vadd.f32 0.0, %v184
  %v186 = vpop.f32.mrb[0].mxu0
  %187 = vmatprep.mubr.f32.mxu0 0.0
  %188 = vmatmul.mubr.f32.gmra.mrb[0].mxu0 %v59
  %v189 = vpop.f32.mrb[0].mxu0
  %v190 = vadd.f32 0.0, %v189
  %v191 = vpop.f32.mrb[0].mxu0
  %192 = vmatprep.mubr.f32.mxu0 0.0
  %193 = vmatmul.mubr.f32.gmra.mrb[0].mxu0 %v60
  %v194 = vpop.f32.mrb[0].mxu0
  %v195 = vadd.f32 0.0, %v194
  %v196 = vpop.f32.mrb[0].mxu0
  %197 = vmatprep.mubr.f32.mxu0 0.0
  %198 = vmatmul.mubr.f32.gmra.mrb[0].mxu0 %v61
  %v199 = vpop.f32.mrb[0].mxu0
  %v200 = vadd.f32 0.0, %v199
  %v201 = vpop.f32.mrb[0].mxu0
  %202 = vmatprep.mubr.f32.mxu0 0.0
  %203 = vmatmul.mubr.f32.gmra.mrb[0].mxu0 %v62
  %v204 = vpop.f32.mrb[0].mxu0
  %v205 = vadd.f32 0.0, %v204
  %v206 = vpop.f32.mrb[0].mxu0
  %207 = vmatprep.mubr.f32.mxu0 0.0
  %208 = vmatmul.mubr.f32.gmra.mrb[0].mxu0 %v63
  %v209 = vpop.f32.mrb[0].mxu0
  %v210 = vadd.f32 0.0, %v209
  %v211 = vpop.f32.mrb[0].mxu0
  %212 = vmatprep.mubr.f32.mxu0 0.0
  %213 = vmatmul.mubr.f32.gmra.mrb[0].mxu0 %v64
  %v214 = vpop.f32.mrb[0].mxu0
  %v215 = vadd.f32 0.0, %v214
  %v216 = vpop.f32.mrb[0].mxu0
  %217 = vmatprep.mubr.f32.mxu0 0.0
  %218 = vmatmul.mubr.f32.gmra.mrb[0].mxu0 %v65
  %v219 = vpop.f32.mrb[0].mxu0
  %v220 = vadd.f32 0.0, %v219
  %v221 = vpop.f32.mrb[0].mxu0
  %222 = vmatprep.mubr.f32.mxu0 0.0
  %223 = vmatmul.mubr.f32.gmra.mrb[0].mxu0 %v66
  %v224 = vpop.f32.mrb[0].mxu0
  %v225 = vadd.f32 0.0, %v224
  %v226 = vpop.f32.mrb[0].mxu0
  %227 = vdwg.mxu0
  %v228 = vld [vmem:[%s3] sm:$0x1]
  %v230 = vlaneseq
  %v231 = vshrl.u32 %v230, 7
  %v232 = vsub.s32 0, %v231
  %v233 = vrot.slane %v228, %v232
  %235 = vmatprep.subr.mxu0 0.0
  %236 = vmatpush1.msra.mxu0 %v150
  %237 = vmatprep.subr.mxu0 0.0
  %238 = vmatpush1.msra.mxu0 %v155
  %239 = vmatprep.subr.mxu0 0.0
  %240 = vmatpush1.msra.mxu0 %v160
  %241 = vmatprep.subr.mxu0 0.0
  %242 = vmatpush1.msra.mxu0 %v165
  %243 = vmatprep.subr.mxu0 0.0
  %244 = vmatpush1.msra.mxu0 %v170
  %245 = vmatprep.subr.mxu0 0.0
  %246 = vmatpush1.msra.mxu0 %v175
  %247 = vmatprep.subr.mxu0 0.0
  %248 = vmatpush1.msra.mxu0 %v180
  %249 = vmatprep.subr.mxu0 0.0
  %250 = vmatpush1.msra.mxu0 %v185
  %251 = vmatprep.subr.mxu0 0.0
  %252 = vmatpush1.msra.mxu0 %v190
  %253 = vmatprep.subr.mxu0 0.0
  %254 = vmatpush1.msra.mxu0 %v195
  %255 = vmatprep.subr.mxu0 0.0
  %256 = vmatpush1.msra.mxu0 %v200
  %257 = vmatprep.subr.mxu0 0.0
  %258 = vmatpush1.msra.mxu0 %v205
  %259 = vmatprep.subr.mxu0 0.0
  %260 = vmatpush1.msra.mxu0 %v210
  %261 = vmatprep.subr.mxu0 0.0
  %262 = vmatpush1.msra.mxu0 %v215
  %263 = vmatprep.subr.mxu0 0.0
  %264 = vmatpush1.msra.mxu0 %v220
  %265 = vmatprep.subr.mxu0 0.0
  %266 = vmatpush1.msra.mxu0 %v225
  %267 = vmatprep.subr.mxu0 0.0
  %268 = vmatpush1.msra.mxu0 0.0
  %269 = vmatprep.subr.mxu0 0.0
  %270 = vmatpush1.msra.mxu0 0.0
  %271 = vmatprep.subr.mxu0 0.0
  %272 = vmatpush1.msra.mxu0 0.0
  %273 = vmatprep.subr.mxu0 0.0
  %274 = vmatpush1.msra.mxu0 0.0
  %275 = vmatprep.subr.mxu0 0.0
  %276 = vmatpush1.msra.mxu0 0.0
  %277 = vmatprep.subr.mxu0 0.0
  %278 = vmatpush1.msra.mxu0 0.0
  %279 = vmatprep.subr.mxu0 0.0
  %280 = vmatpush1.msra.mxu0 0.0
  %281 = vmatprep.subr.mxu0 0.0
  %282 = vmatpush1.msra.mxu0 0.0
  %283 = vmatprep.subr.mxu0 0.0
  %284 = vmatpush1.msra.mxu0 0.0
  %285 = vmatprep.subr.mxu0 0.0
  %286 = vmatpush1.msra.mxu0 0.0
  %287 = vmatprep.subr.mxu0 0.0
  %288 = vmatpush1.msra.mxu0 0.0
  %289 = vmatprep.subr.mxu0 0.0
  %290 = vmatpush1.msra.mxu0 0.0
  %291 = vmatprep.subr.mxu0 0.0
  %292 = vmatpush1.msra.mxu0 0.0
  %293 = vmatprep.subr.mxu0 0.0
  %294 = vmatpush1.msra.mxu0 0.0
  %295 = vmatprep.subr.mxu0 0.0
  %296 = vmatpush1.msra.mxu0 0.0
  %297 = vmatprep.subr.mxu0 0.0
  %298 = vmatpush1.msra.mxu0 0.0
  %299 = vmatprep.mubr.f32.mxu0 0.0
  %300 = vmatmul.mubr.f32.gmra.mrb[0].mxu0 %v35
  %v301 = vpop.f32.mrb[0].mxu0
  %v302 = vadd.f32 %v233, %v301
  %v303 = vpop.f32.mrb[0].mxu0
  %304 = vmatprep.mubr.f32.mxu0 0.0
  %305 = vmatmul.mubr.f32.gmra.mrb[0].mxu0 %v36
  %v306 = vpop.f32.mrb[0].mxu0
  %v307 = vadd.f32 %v233, %v306
  %v308 = vpop.f32.mrb[0].mxu0
  %309 = vmatprep.mubr.f32.mxu0 0.0
  %310 = vmatmul.mubr.f32.gmra.mrb[0].mxu0 %v37
  %v311 = vpop.f32.mrb[0].mxu0
  %v312 = vadd.f32 %v233, %v311
  %v313 = vpop.f32.mrb[0].mxu0
  %314 = vmatprep.mubr.f32.mxu0 0.0
  %315 = vmatmul.mubr.f32.gmra.mrb[0].mxu0 %v38
  %v316 = vpop.f32.mrb[0].mxu0
  %v317 = vadd.f32 %v233, %v316
  %v318 = vpop.f32.mrb[0].mxu0
  %319 = vmatprep.mubr.f32.mxu0 0.0
  %320 = vmatmul.mubr.f32.gmra.mrb[0].mxu0 %v39
  %v321 = vpop.f32.mrb[0].mxu0
  %v322 = vadd.f32 %v233, %v321
  %v323 = vpop.f32.mrb[0].mxu0
  %324 = vmatprep.mubr.f32.mxu0 0.0
  %325 = vmatmul.mubr.f32.gmra.mrb[0].mxu0 %v40
  %v326 = vpop.f32.mrb[0].mxu0
  %v327 = vadd.f32 %v233, %v326
  %v328 = vpop.f32.mrb[0].mxu0
  %329 = vmatprep.mubr.f32.mxu0 0.0
  %330 = vmatmul.mubr.f32.gmra.mrb[0].mxu0 %v41
  %v331 = vpop.f32.mrb[0].mxu0
  %v332 = vadd.f32 %v233, %v331
  %v333 = vpop.f32.mrb[0].mxu0
  %334 = vmatprep.mubr.f32.mxu0 0.0
  %335 = vmatmul.mubr.f32.gmra.mrb[0].mxu0 %v42
  %v336 = vpop.f32.mrb[0].mxu0
  %v337 = vadd.f32 %v233, %v336
  %v338 = vpop.f32.mrb[0].mxu0
  %339 = vmatprep.mubr.f32.mxu0 0.0
  %340 = vmatmul.mubr.f32.gmra.mrb[0].mxu0 %v43
  %v341 = vpop.f32.mrb[0].mxu0
  %v342 = vadd.f32 %v233, %v341
  %v343 = vpop.f32.mrb[0].mxu0
  %344 = vmatprep.mubr.f32.mxu0 0.0
  %345 = vmatmul.mubr.f32.gmra.mrb[0].mxu0 %v44
  %v346 = vpop.f32.mrb[0].mxu0
  %v347 = vadd.f32 %v233, %v346
  %v348 = vpop.f32.mrb[0].mxu0
  %349 = vmatprep.mubr.f32.mxu0 0.0
  %350 = vmatmul.mubr.f32.gmra.mrb[0].mxu0 %v45
  %v351 = vpop.f32.mrb[0].mxu0
  %v352 = vadd.f32 %v233, %v351
  %v353 = vpop.f32.mrb[0].mxu0
  %354 = vmatprep.mubr.f32.mxu0 0.0
  %355 = vmatmul.mubr.f32.gmra.mrb[0].mxu0 %v46
  %v356 = vpop.f32.mrb[0].mxu0
  %v357 = vadd.f32 %v233, %v356
  %v358 = vpop.f32.mrb[0].mxu0
  %359 = vmatprep.mubr.f32.mxu0 0.0
  %360 = vmatmul.mubr.f32.gmra.mrb[0].mxu0 %v47
  %v361 = vpop.f32.mrb[0].mxu0
  %v362 = vadd.f32 %v233, %v361
  %v363 = vpop.f32.mrb[0].mxu0
  %364 = vmatprep.mubr.f32.mxu0 0.0
  %365 = vmatmul.mubr.f32.gmra.mrb[0].mxu0 %v48
  %v366 = vpop.f32.mrb[0].mxu0
  %v367 = vadd.f32 %v233, %v366
  %v368 = vpop.f32.mrb[0].mxu0
  %369 = vmatprep.mubr.f32.mxu0 0.0
  %370 = vmatmul.mubr.f32.gmra.mrb[0].mxu0 %v49
  %v371 = vpop.f32.mrb[0].mxu0
  %v372 = vadd.f32 %v233, %v371
  %v373 = vpop.f32.mrb[0].mxu0
  %374 = vmatprep.mubr.f32.mxu0 0.0
  %375 = vmatmul.mubr.f32.gmra.mrb[0].mxu0 %v50
  %v376 = vpop.f32.mrb[0].mxu0
  %v377 = vadd.f32 %v233, %v376
  %v378 = vpop.f32.mrb[0].mxu0
  %379 = vdwg.mxu0
  %v380 = vtanh.pop %v302
  %v381 = vtanh.pop %v307
  %v382 = vtanh.pop %v312
  %v383 = vtanh.pop %v317
  %v384 = vtanh.pop %v322
  %v385 = vtanh.pop %v327
  %v386 = vtanh.pop %v332
  %v387 = vtanh.pop %v337
  %v388 = vtanh.pop %v342
  %v389 = vtanh.pop %v347
  %v390 = vtanh.pop %v352
  %v391 = vtanh.pop %v357
  %v392 = vtanh.pop %v362
  %v393 = vtanh.pop %v367
  %v394 = vtanh.pop %v372
  %v395 = vtanh.pop %v377
  %v396 = vld [vmem:[%s4] sm:$0xff]
  %v397 = vld [vmem:[%s4 + $0x8] sm:$0xff]
  %v398 = vld [vmem:[%s4 + $0x10] sm:$0xff]
  %v399 = vld [vmem:[%s4 + $0x18] sm:$0xff]
  %v400 = vld [vmem:[%s4 + $0x20] sm:$0xff]
  %v401 = vld [vmem:[%s4 + $0x28] sm:$0xff]
  %v402 = vld [vmem:[%s4 + $0x30] sm:$0xff]
  %v403 = vld [vmem:[%s4 + $0x38] sm:$0xff]
  %v404 = vld [vmem:[%s4 + $0x40] sm:$0xff]
  %v405 = vld [vmem:[%s4 + $0x48] sm:$0xff]
  %v406 = vld [vmem:[%s4 + $0x50] sm:$0xff]
  %v407 = vld [vmem:[%s4 + $0x58] sm:$0xff]
  %v408 = vld [vmem:[%s4 + $0x60] sm:$0xff]
  %v409 = vld [vmem:[%s4 + $0x68] sm:$0xff]
  %v410 = vld [vmem:[%s4 + $0x70] sm:$0xff]
  %v411 = vld [vmem:[%s4 + $0x78] sm:$0xff]
  %412 = vmatprep.subr.mxu0 0.0
  %413 = vmatpush1.msra.mxu0 %v396
  %414 = vmatprep.subr.mxu0 0.0
  %415 = vmatpush1.msra.mxu0 %v397
  %416 = vmatprep.subr.mxu0 0.0
  %417 = vmatpush1.msra.mxu0 %v398
  %418 = vmatprep.subr.mxu0 0.0
  %419 = vmatpush1.msra.mxu0 %v399
  %420 = vmatprep.subr.mxu0 0.0
  %421 = vmatpush1.msra.mxu0 %v400
  %422 = vmatprep.subr.mxu0 0.0
  %423 = vmatpush1.msra.mxu0 %v401
  %424 = vmatprep.subr.mxu0 0.0
  %425 = vmatpush1.msra.mxu0 %v402
  %426 = vmatprep.subr.mxu0 0.0
  %427 = vmatpush1.msra.mxu0 %v403
  %428 = vmatprep.subr.mxu0 0.0
  %429 = vmatpush1.msra.mxu0 %v404
  %430 = vmatprep.subr.mxu0 0.0
  %431 = vmatpush1.msra.mxu0 %v405
  %432 = vmatprep.subr.mxu0 0.0
  %433 = vmatpush1.msra.mxu0 %v406
  %434 = vmatprep.subr.mxu0 0.0
  %435 = vmatpush1.msra.mxu0 %v407
  %436 = vmatprep.subr.mxu0 0.0
  %437 = vmatpush1.msra.mxu0 %v408
  %438 = vmatprep.subr.mxu0 0.0
  %439 = vmatpush1.msra.mxu0 %v409
  %440 = vmatprep.subr.mxu0 0.0
  %441 = vmatpush1.msra.mxu0 %v410
  %442 = vmatprep.subr.mxu0 0.0
  %443 = vmatpush1.msra.mxu0 %v411
  %444 = vmatprep.subr.mxu0 0.0
  %445 = vmatpush1.msra.mxu0 0.0
  %446 = vmatprep.subr.mxu0 0.0
  %447 = vmatpush1.msra.mxu0 0.0
  %448 = vmatprep.subr.mxu0 0.0
  %449 = vmatpush1.msra.mxu0 0.0
  %450 = vmatprep.subr.mxu0 0.0
  %451 = vmatpush1.msra.mxu0 0.0
  %452 = vmatprep.subr.mxu0 0.0
  %453 = vmatpush1.msra.mxu0 0.0
  %454 = vmatprep.subr.mxu0 0.0
  %455 = vmatpush1.msra.mxu0 0.0
  %456 = vmatprep.subr.mxu0 0.0
  %457 = vmatpush1.msra.mxu0 0.0
  %458 = vmatprep.subr.mxu0 0.0
  %459 = vmatpush1.msra.mxu0 0.0
  %460 = vmatprep.subr.mxu0 0.0
  %461 = vmatpush1.msra.mxu0 0.0
  %462 = vmatprep.subr.mxu0 0.0
  %463 = vmatpush1.msra.mxu0 0.0
  %464 = vmatprep.subr.mxu0 0.0
  %465 = vmatpush1.msra.mxu0 0.0
  %466 = vmatprep.subr.mxu0 0.0
  %467 = vmatpush1.msra.mxu0 0.0
  %468 = vmatprep.subr.mxu0 0.0
  %469 = vmatpush1.msra.mxu0 0.0
  %470 = vmatprep.subr.mxu0 0.0
  %471 = vmatpush1.msra.mxu0 0.0
  %472 = vmatprep.subr.mxu0 0.0
  %473 = vmatpush1.msra.mxu0 0.0
  %474 = vmatprep.subr.mxu0 0.0
  %475 = vmatpush1.msra.mxu0 0.0
  %476 = vmatprep.mubr.f32.mxu0 0.0
  %477 = vmatmul.mubr.f32.gmra.mrb[0].mxu0 %v380
  %v478 = vpop.f32.mrb[0].mxu0
  %v479 = vadd.f32 0.0, %v478
  %v480 = vpop.f32.mrb[0].mxu0
  %481 = vmatprep.mubr.f32.mxu0 0.0
  %482 = vmatmul.mubr.f32.gmra.mrb[0].mxu0 %v381
  %v483 = vpop.f32.mrb[0].mxu0
  %v484 = vadd.f32 0.0, %v483
  %v485 = vpop.f32.mrb[0].mxu0
  %486 = vmatprep.mubr.f32.mxu0 0.0
  %487 = vmatmul.mubr.f32.gmra.mrb[0].mxu0 %v382
  %v488 = vpop.f32.mrb[0].mxu0
  %v489 = vadd.f32 0.0, %v488
  %v490 = vpop.f32.mrb[0].mxu0
  %491 = vmatprep.mubr.f32.mxu0 0.0
  %492 = vmatmul.mubr.f32.gmra.mrb[0].mxu0 %v383
  %v493 = vpop.f32.mrb[0].mxu0
  %v494 = vadd.f32 0.0, %v493
  %v495 = vpop.f32.mrb[0].mxu0
  %496 = vmatprep.mubr.f32.mxu0 0.0
  %497 = vmatmul.mubr.f32.gmra.mrb[0].mxu0 %v384
  %v498 = vpop.f32.mrb[0].mxu0
  %v499 = vadd.f32 0.0, %v498
  %v500 = vpop.f32.mrb[0].mxu0
  %501 = vmatprep.mubr.f32.mxu0 0.0
  %502 = vmatmul.mubr.f32.gmra.mrb[0].mxu0 %v385
  %v503 = vpop.f32.mrb[0].mxu0
  %v504 = vadd.f32 0.0, %v503
  %v505 = vpop.f32.mrb[0].mxu0
  %506 = vmatprep.mubr.f32.mxu0 0.0
  %507 = vmatmul.mubr.f32.gmra.mrb[0].mxu0 %v386
  %v508 = vpop.f32.mrb[0].mxu0
  %v509 = vadd.f32 0.0, %v508
  %v510 = vpop.f32.mrb[0].mxu0
  %511 = vmatprep.mubr.f32.mxu0 0.0
  %512 = vmatmul.mubr.f32.gmra.mrb[0].mxu0 %v387
  %v513 = vpop.f32.mrb[0].mxu0
  %v514 = vadd.f32 0.0, %v513
  %v515 = vpop.f32.mrb[0].mxu0
  %516 = vmatprep.mubr.f32.mxu0 0.0
  %517 = vmatmul.mubr.f32.gmra.mrb[0].mxu0 %v388
  %v518 = vpop.f32.mrb[0].mxu0
  %v519 = vadd.f32 0.0, %v518
  %v520 = vpop.f32.mrb[0].mxu0
  %521 = vmatprep.mubr.f32.mxu0 0.0
  %522 = vmatmul.mubr.f32.gmra.mrb[0].mxu0 %v389
  %v523 = vpop.f32.mrb[0].mxu0
  %v524 = vadd.f32 0.0, %v523
  %v525 = vpop.f32.mrb[0].mxu0
  %526 = vmatprep.mubr.f32.mxu0 0.0
  %527 = vmatmul.mubr.f32.gmra.mrb[0].mxu0 %v390
  %v528 = vpop.f32.mrb[0].mxu0
  %v529 = vadd.f32 0.0, %v528
  %v530 = vpop.f32.mrb[0].mxu0
  %531 = vmatprep.mubr.f32.mxu0 0.0
  %532 = vmatmul.mubr.f32.gmra.mrb[0].mxu0 %v391
  %v533 = vpop.f32.mrb[0].mxu0
  %v534 = vadd.f32 0.0, %v533
  %v535 = vpop.f32.mrb[0].mxu0
  %536 = vmatprep.mubr.f32.mxu0 0.0
  %537 = vmatmul.mubr.f32.gmra.mrb[0].mxu0 %v392
  %v538 = vpop.f32.mrb[0].mxu0
  %v539 = vadd.f32 0.0, %v538
  %v540 = vpop.f32.mrb[0].mxu0
  %541 = vmatprep.mubr.f32.mxu0 0.0
  %542 = vmatmul.mubr.f32.gmra.mrb[0].mxu0 %v393
  %v543 = vpop.f32.mrb[0].mxu0
  %v544 = vadd.f32 0.0, %v543
  %v545 = vpop.f32.mrb[0].mxu0
  %546 = vmatprep.mubr.f32.mxu0 0.0
  %547 = vmatmul.mubr.f32.gmra.mrb[0].mxu0 %v394
  %v548 = vpop.f32.mrb[0].mxu0
  %v549 = vadd.f32 0.0, %v548
  %v550 = vpop.f32.mrb[0].mxu0
  %551 = vmatprep.mubr.f32.mxu0 0.0
  %552 = vmatmul.mubr.f32.gmra.mrb[0].mxu0 %v395
  %v553 = vpop.f32.mrb[0].mxu0
  %v554 = vadd.f32 0.0, %v553
  %v555 = vpop.f32.mrb[0].mxu0
  %556 = vdwg.mxu0
  %v557 = vld [vmem:[%s5] sm:$0x1]
  %v559 = vlaneseq
  %v560 = vshrl.u32 %v559, 7
  %v561 = vsub.s32 0, %v560
  %v562 = vrot.slane %v557, %v561
  %564 = vmatprep.subr.mxu0 0.0
  %565 = vmatpush1.msra.mxu0 %v479
  %566 = vmatprep.subr.mxu0 0.0
  %567 = vmatpush1.msra.mxu0 %v484
  %568 = vmatprep.subr.mxu0 0.0
  %569 = vmatpush1.msra.mxu0 %v489
  %570 = vmatprep.subr.mxu0 0.0
  %571 = vmatpush1.msra.mxu0 %v494
  %572 = vmatprep.subr.mxu0 0.0
  %573 = vmatpush1.msra.mxu0 %v499
  %574 = vmatprep.subr.mxu0 0.0
  %575 = vmatpush1.msra.mxu0 %v504
  %576 = vmatprep.subr.mxu0 0.0
  %577 = vmatpush1.msra.mxu0 %v509
  %578 = vmatprep.subr.mxu0 0.0
  %579 = vmatpush1.msra.mxu0 %v514
  %580 = vmatprep.subr.mxu0 0.0
  %581 = vmatpush1.msra.mxu0 %v519
  %582 = vmatprep.subr.mxu0 0.0
  %583 = vmatpush1.msra.mxu0 %v524
  %584 = vmatprep.subr.mxu0 0.0
  %585 = vmatpush1.msra.mxu0 %v529
  %586 = vmatprep.subr.mxu0 0.0
  %587 = vmatpush1.msra.mxu0 %v534
  %588 = vmatprep.subr.mxu0 0.0
  %589 = vmatpush1.msra.mxu0 %v539
  %590 = vmatprep.subr.mxu0 0.0
  %591 = vmatpush1.msra.mxu0 %v544
  %592 = vmatprep.subr.mxu0 0.0
  %593 = vmatpush1.msra.mxu0 %v549
  %594 = vmatprep.subr.mxu0 0.0
  %595 = vmatpush1.msra.mxu0 %v554
  %596 = vmatprep.subr.mxu0 0.0
  %597 = vmatpush1.msra.mxu0 0.0
  %598 = vmatprep.subr.mxu0 0.0
  %599 = vmatpush1.msra.mxu0 0.0
  %600 = vmatprep.subr.mxu0 0.0
  %601 = vmatpush1.msra.mxu0 0.0
  %602 = vmatprep.subr.mxu0 0.0
  %603 = vmatpush1.msra.mxu0 0.0
  %604 = vmatprep.subr.mxu0 0.0
  %605 = vmatpush1.msra.mxu0 0.0
  %606 = vmatprep.subr.mxu0 0.0
  %607 = vmatpush1.msra.mxu0 0.0
  %608 = vmatprep.subr.mxu0 0.0
  %609 = vmatpush1.msra.mxu0 0.0
  %610 = vmatprep.subr.mxu0 0.0
  %611 = vmatpush1.msra.mxu0 0.0
  %612 = vmatprep.subr.mxu0 0.0
  %613 = vmatpush1.msra.mxu0 0.0
  %614 = vmatprep.subr.mxu0 0.0
  %615 = vmatpush1.msra.mxu0 0.0
  %616 = vmatprep.subr.mxu0 0.0
  %617 = vmatpush1.msra.mxu0 0.0
  %618 = vmatprep.subr.mxu0 0.0
  %619 = vmatpush1.msra.mxu0 0.0
  %620 = vmatprep.subr.mxu0 0.0
  %621 = vmatpush1.msra.mxu0 0.0
  %622 = vmatprep.subr.mxu0 0.0
  %623 = vmatpush1.msra.mxu0 0.0
  %624 = vmatprep.subr.mxu0 0.0
  %625 = vmatpush1.msra.mxu0 0.0
  %626 = vmatprep.subr.mxu0 0.0
  %627 = vmatpush1.msra.mxu0 0.0
  %628 = vmatprep.mubr.f32.mxu0 0.0
  %629 = vmatmul.mubr.f32.gmra.mrb[0].mxu0 %v35
  %v630 = vpop.f32.mrb[0].mxu0
  %v631 = vadd.f32 %v562, %v630
  %v632 = vpop.f32.mrb[0].mxu0
  %633 = vmatprep.mubr.f32.mxu0 0.0
  %634 = vmatmul.mubr.f32.gmra.mrb[0].mxu0 %v36
  %v635 = vpop.f32.mrb[0].mxu0
  %v636 = vadd.f32 %v562, %v635
  %v637 = vpop.f32.mrb[0].mxu0
  %638 = vmatprep.mubr.f32.mxu0 0.0
  %639 = vmatmul.mubr.f32.gmra.mrb[0].mxu0 %v37
  %v640 = vpop.f32.mrb[0].mxu0
  %v641 = vadd.f32 %v562, %v640
  %v642 = vpop.f32.mrb[0].mxu0
  %643 = vmatprep.mubr.f32.mxu0 0.0
  %644 = vmatmul.mubr.f32.gmra.mrb[0].mxu0 %v38
  %v645 = vpop.f32.mrb[0].mxu0
  %v646 = vadd.f32 %v562, %v645
  %v647 = vpop.f32.mrb[0].mxu0
  %648 = vmatprep.mubr.f32.mxu0 0.0
  %649 = vmatmul.mubr.f32.gmra.mrb[0].mxu0 %v39
  %v650 = vpop.f32.mrb[0].mxu0
  %v651 = vadd.f32 %v562, %v650
  %v652 = vpop.f32.mrb[0].mxu0
  %653 = vmatprep.mubr.f32.mxu0 0.0
  %654 = vmatmul.mubr.f32.gmra.mrb[0].mxu0 %v40
  %v655 = vpop.f32.mrb[0].mxu0
  %v656 = vadd.f32 %v562, %v655
  %v657 = vpop.f32.mrb[0].mxu0
  %658 = vmatprep.mubr.f32.mxu0 0.0
  %659 = vmatmul.mubr.f32.gmra.mrb[0].mxu0 %v41
  %v660 = vpop.f32.mrb[0].mxu0
  %v661 = vadd.f32 %v562, %v660
  %v662 = vpop.f32.mrb[0].mxu0
  %663 = vmatprep.mubr.f32.mxu0 0.0
  %664 = vmatmul.mubr.f32.gmra.mrb[0].mxu0 %v42
  %v665 = vpop.f32.mrb[0].mxu0
  %v666 = vadd.f32 %v562, %v665
  %v667 = vpop.f32.mrb[0].mxu0
  %668 = vmatprep.mubr.f32.mxu0 0.0
  %669 = vmatmul.mubr.f32.gmra.mrb[0].mxu0 %v43
  %v670 = vpop.f32.mrb[0].mxu0
  %v671 = vadd.f32 %v562, %v670
  %v672 = vpop.f32.mrb[0].mxu0
  %673 = vmatprep.mubr.f32.mxu0 0.0
  %674 = vmatmul.mubr.f32.gmra.mrb[0].mxu0 %v44
  %v675 = vpop.f32.mrb[0].mxu0
  %v676 = vadd.f32 %v562, %v675
  %v677 = vpop.f32.mrb[0].mxu0
  %678 = vmatprep.mubr.f32.mxu0 0.0
  %679 = vmatmul.mubr.f32.gmra.mrb[0].mxu0 %v45
  %v680 = vpop.f32.mrb[0].mxu0
  %v681 = vadd.f32 %v562, %v680
  %v682 = vpop.f32.mrb[0].mxu0
  %683 = vmatprep.mubr.f32.mxu0 0.0
  %684 = vmatmul.mubr.f32.gmra.mrb[0].mxu0 %v46
  %v685 = vpop.f32.mrb[0].mxu0
  %v686 = vadd.f32 %v562, %v685
  %v687 = vpop.f32.mrb[0].mxu0
  %688 = vmatprep.mubr.f32.mxu0 0.0
  %689 = vmatmul.mubr.f32.gmra.mrb[0].mxu0 %v47
  %v690 = vpop.f32.mrb[0].mxu0
  %v691 = vadd.f32 %v562, %v690
  %v692 = vpop.f32.mrb[0].mxu0
  %693 = vmatprep.mubr.f32.mxu0 0.0
  %694 = vmatmul.mubr.f32.gmra.mrb[0].mxu0 %v48
  %v695 = vpop.f32.mrb[0].mxu0
  %v696 = vadd.f32 %v562, %v695
  %v697 = vpop.f32.mrb[0].mxu0
  %698 = vmatprep.mubr.f32.mxu0 0.0
  %699 = vmatmul.mubr.f32.gmra.mrb[0].mxu0 %v49
  %v700 = vpop.f32.mrb[0].mxu0
  %v701 = vadd.f32 %v562, %v700
  %v702 = vpop.f32.mrb[0].mxu0
  %703 = vmatprep.mubr.f32.mxu0 0.0
  %704 = vmatmul.mubr.f32.gmra.mrb[0].mxu0 %v50
  %v705 = vpop.f32.mrb[0].mxu0
  %v706 = vadd.f32 %v562, %v705
  %v707 = vpop.f32.mrb[0].mxu0
  %708 = vdwg.mxu0
  %v709 = vtanh.pop %v631
  %v710 = vtanh.pop %v636
  %v711 = vtanh.pop %v641
  %v712 = vtanh.pop %v646
  %v713 = vtanh.pop %v651
  %v714 = vtanh.pop %v656
  %v715 = vtanh.pop %v661
  %v716 = vtanh.pop %v666
  %v717 = vtanh.pop %v671
  %v718 = vtanh.pop %v676
  %v719 = vtanh.pop %v681
  %v720 = vtanh.pop %v686
  %v721 = vtanh.pop %v691
  %v722 = vtanh.pop %v696
  %v723 = vtanh.pop %v701
  %v724 = vtanh.pop %v706
  %v725 = vld [vmem:[%s6] sm:$0xff]
  %v726 = vld [vmem:[%s6 + $0x8] sm:$0xff]
  %v727 = vld [vmem:[%s6 + $0x10] sm:$0xff]
  %v728 = vld [vmem:[%s6 + $0x18] sm:$0xff]
  %v729 = vld [vmem:[%s6 + $0x20] sm:$0xff]
  %v730 = vld [vmem:[%s6 + $0x28] sm:$0xff]
  %v731 = vld [vmem:[%s6 + $0x30] sm:$0xff]
  %v732 = vld [vmem:[%s6 + $0x38] sm:$0xff]
  %v733 = vld [vmem:[%s6 + $0x40] sm:$0xff]
  %v734 = vld [vmem:[%s6 + $0x48] sm:$0xff]
  %v735 = vld [vmem:[%s6 + $0x50] sm:$0xff]
  %v736 = vld [vmem:[%s6 + $0x58] sm:$0xff]
  %v737 = vld [vmem:[%s6 + $0x60] sm:$0xff]
  %v738 = vld [vmem:[%s6 + $0x68] sm:$0xff]
  %v739 = vld [vmem:[%s6 + $0x70] sm:$0xff]
  %v740 = vld [vmem:[%s6 + $0x78] sm:$0xff]
  %741 = vmatprep.subr.mxu0 0.0
  %742 = vmatpush1.msra.mxu0 %v725
  %743 = vmatprep.subr.mxu0 0.0
  %744 = vmatpush1.msra.mxu0 %v726
  %745 = vmatprep.subr.mxu0 0.0
  %746 = vmatpush1.msra.mxu0 %v727
  %747 = vmatprep.subr.mxu0 0.0
  %748 = vmatpush1.msra.mxu0 %v728
  %749 = vmatprep.subr.mxu0 0.0
  %750 = vmatpush1.msra.mxu0 %v729
  %751 = vmatprep.subr.mxu0 0.0
  %752 = vmatpush1.msra.mxu0 %v730
  %753 = vmatprep.subr.mxu0 0.0
  %754 = vmatpush1.msra.mxu0 %v731
  %755 = vmatprep.subr.mxu0 0.0
  %756 = vmatpush1.msra.mxu0 %v732
  %757 = vmatprep.subr.mxu0 0.0
  %758 = vmatpush1.msra.mxu0 %v733
  %759 = vmatprep.subr.mxu0 0.0
  %760 = vmatpush1.msra.mxu0 %v734
  %761 = vmatprep.subr.mxu0 0.0
  %762 = vmatpush1.msra.mxu0 %v735
  %763 = vmatprep.subr.mxu0 0.0
  %764 = vmatpush1.msra.mxu0 %v736
  %765 = vmatprep.subr.mxu0 0.0
  %766 = vmatpush1.msra.mxu0 %v737
  %767 = vmatprep.subr.mxu0 0.0
  %768 = vmatpush1.msra.mxu0 %v738
  %769 = vmatprep.subr.mxu0 0.0
  %770 = vmatpush1.msra.mxu0 %v739
  %771 = vmatprep.subr.mxu0 0.0
  %772 = vmatpush1.msra.mxu0 %v740
  %773 = vmatprep.subr.mxu0 0.0
  %774 = vmatpush1.msra.mxu0 0.0
  %775 = vmatprep.subr.mxu0 0.0
  %776 = vmatpush1.msra.mxu0 0.0
  %777 = vmatprep.subr.mxu0 0.0
  %778 = vmatpush1.msra.mxu0 0.0
  %779 = vmatprep.subr.mxu0 0.0
  %780 = vmatpush1.msra.mxu0 0.0
  %781 = vmatprep.subr.mxu0 0.0
  %782 = vmatpush1.msra.mxu0 0.0
  %783 = vmatprep.subr.mxu0 0.0
  %784 = vmatpush1.msra.mxu0 0.0
  %785 = vmatprep.subr.mxu0 0.0
  %786 = vmatpush1.msra.mxu0 0.0
  %787 = vmatprep.subr.mxu0 0.0
  %788 = vmatpush1.msra.mxu0 0.0
  %789 = vmatprep.subr.mxu0 0.0
  %790 = vmatpush1.msra.mxu0 0.0
  %791 = vmatprep.subr.mxu0 0.0
  %792 = vmatpush1.msra.mxu0 0.0
  %793 = vmatprep.subr.mxu0 0.0
  %794 = vmatpush1.msra.mxu0 0.0
  %795 = vmatprep.subr.mxu0 0.0
  %796 = vmatpush1.msra.mxu0 0.0
  %797 = vmatprep.subr.mxu0 0.0
  %798 = vmatpush1.msra.mxu0 0.0
  %799 = vmatprep.subr.mxu0 0.0
  %800 = vmatpush1.msra.mxu0 0.0
  %801 = vmatprep.subr.mxu0 0.0
  %802 = vmatpush1.msra.mxu0 0.0
  %803 = vmatprep.subr.mxu0 0.0
  %804 = vmatpush1.msra.mxu0 0.0
  %805 = vmatprep.mubr.f32.mxu0 0.0
  %806 = vmatmul.mubr.f32.gmra.mrb[0].mxu0 %v709
  %v807 = vpop.f32.mrb[0].mxu0
  %v808 = vadd.f32 0.0, %v807
  %v809 = vpop.f32.mrb[0].mxu0
  %810 = vmatprep.mubr.f32.mxu0 0.0
  %811 = vmatmul.mubr.f32.gmra.mrb[0].mxu0 %v710
  %v812 = vpop.f32.mrb[0].mxu0
  %v813 = vadd.f32 0.0, %v812
  %v814 = vpop.f32.mrb[0].mxu0
  %815 = vmatprep.mubr.f32.mxu0 0.0
  %816 = vmatmul.mubr.f32.gmra.mrb[0].mxu0 %v711
  %v817 = vpop.f32.mrb[0].mxu0
  %v818 = vadd.f32 0.0, %v817
  %v819 = vpop.f32.mrb[0].mxu0
  %820 = vmatprep.mubr.f32.mxu0 0.0
  %821 = vmatmul.mubr.f32.gmra.mrb[0].mxu0 %v712
  %v822 = vpop.f32.mrb[0].mxu0
  %v823 = vadd.f32 0.0, %v822
  %v824 = vpop.f32.mrb[0].mxu0
  %825 = vmatprep.mubr.f32.mxu0 0.0
  %826 = vmatmul.mubr.f32.gmra.mrb[0].mxu0 %v713
  %v827 = vpop.f32.mrb[0].mxu0
  %v828 = vadd.f32 0.0, %v827
  %v829 = vpop.f32.mrb[0].mxu0
  %830 = vmatprep.mubr.f32.mxu0 0.0
  %831 = vmatmul.mubr.f32.gmra.mrb[0].mxu0 %v714
  %v832 = vpop.f32.mrb[0].mxu0
  %v833 = vadd.f32 0.0, %v832
  %v834 = vpop.f32.mrb[0].mxu0
  %835 = vmatprep.mubr.f32.mxu0 0.0
  %836 = vmatmul.mubr.f32.gmra.mrb[0].mxu0 %v715
  %v837 = vpop.f32.mrb[0].mxu0
  %v838 = vadd.f32 0.0, %v837
  %v839 = vpop.f32.mrb[0].mxu0
  %840 = vmatprep.mubr.f32.mxu0 0.0
  %841 = vmatmul.mubr.f32.gmra.mrb[0].mxu0 %v716
  %v842 = vpop.f32.mrb[0].mxu0
  %v843 = vadd.f32 0.0, %v842
  %v844 = vpop.f32.mrb[0].mxu0
  %845 = vmatprep.mubr.f32.mxu0 0.0
  %846 = vmatmul.mubr.f32.gmra.mrb[0].mxu0 %v717
  %v847 = vpop.f32.mrb[0].mxu0
  %v848 = vadd.f32 0.0, %v847
  %v849 = vpop.f32.mrb[0].mxu0
  %850 = vmatprep.mubr.f32.mxu0 0.0
  %851 = vmatmul.mubr.f32.gmra.mrb[0].mxu0 %v718
  %v852 = vpop.f32.mrb[0].mxu0
  %v853 = vadd.f32 0.0, %v852
  %v854 = vpop.f32.mrb[0].mxu0
  %855 = vmatprep.mubr.f32.mxu0 0.0
  %856 = vmatmul.mubr.f32.gmra.mrb[0].mxu0 %v719
  %v857 = vpop.f32.mrb[0].mxu0
  %v858 = vadd.f32 0.0, %v857
  %v859 = vpop.f32.mrb[0].mxu0
  %860 = vmatprep.mubr.f32.mxu0 0.0
  %861 = vmatmul.mubr.f32.gmra.mrb[0].mxu0 %v720
  %v862 = vpop.f32.mrb[0].mxu0
  %v863 = vadd.f32 0.0, %v862
  %v864 = vpop.f32.mrb[0].mxu0
  %865 = vmatprep.mubr.f32.mxu0 0.0
  %866 = vmatmul.mubr.f32.gmra.mrb[0].mxu0 %v721
  %v867 = vpop.f32.mrb[0].mxu0
  %v868 = vadd.f32 0.0, %v867
  %v869 = vpop.f32.mrb[0].mxu0
  %870 = vmatprep.mubr.f32.mxu0 0.0
  %871 = vmatmul.mubr.f32.gmra.mrb[0].mxu0 %v722
  %v872 = vpop.f32.mrb[0].mxu0
  %v873 = vadd.f32 0.0, %v872
  %v874 = vpop.f32.mrb[0].mxu0
  %875 = vmatprep.mubr.f32.mxu0 0.0
  %876 = vmatmul.mubr.f32.gmra.mrb[0].mxu0 %v723
  %v877 = vpop.f32.mrb[0].mxu0
  %v878 = vadd.f32 0.0, %v877
  %v879 = vpop.f32.mrb[0].mxu0
  %880 = vmatprep.mubr.f32.mxu0 0.0
  %881 = vmatmul.mubr.f32.gmra.mrb[0].mxu0 %v724
  %v882 = vpop.f32.mrb[0].mxu0
  %v883 = vadd.f32 0.0, %v882
  %v884 = vpop.f32.mrb[0].mxu0
  %885 = vdwg.mxu0
  %v886 = vld [vmem:[%s7] sm:$0x1]
  %v888 = vlaneseq
  %v889 = vshrl.u32 %v888, 7
  %v890 = vsub.s32 0, %v889
  %v891 = vrot.slane %v886, %v890
  %893 = vmatprep.subr.mxu0 0.0
  %894 = vmatpush1.msra.mxu0 %v808
  %895 = vmatprep.subr.mxu0 0.0
  %896 = vmatpush1.msra.mxu0 %v813
  %897 = vmatprep.subr.mxu0 0.0
  %898 = vmatpush1.msra.mxu0 %v818
  %899 = vmatprep.subr.mxu0 0.0
  %900 = vmatpush1.msra.mxu0 %v823
  %901 = vmatprep.subr.mxu0 0.0
  %902 = vmatpush1.msra.mxu0 %v828
  %903 = vmatprep.subr.mxu0 0.0
  %904 = vmatpush1.msra.mxu0 %v833
  %905 = vmatprep.subr.mxu0 0.0
  %906 = vmatpush1.msra.mxu0 %v838
  %907 = vmatprep.subr.mxu0 0.0
  %908 = vmatpush1.msra.mxu0 %v843
  %909 = vmatprep.subr.mxu0 0.0
  %910 = vmatpush1.msra.mxu0 %v848
  %911 = vmatprep.subr.mxu0 0.0
  %912 = vmatpush1.msra.mxu0 %v853
  %913 = vmatprep.subr.mxu0 0.0
  %914 = vmatpush1.msra.mxu0 %v858
  %915 = vmatprep.subr.mxu0 0.0
  %916 = vmatpush1.msra.mxu0 %v863
  %917 = vmatprep.subr.mxu0 0.0
  %918 = vmatpush1.msra.mxu0 %v868
  %919 = vmatprep.subr.mxu0 0.0
  %920 = vmatpush1.msra.mxu0 %v873
  %921 = vmatprep.subr.mxu0 0.0
  %922 = vmatpush1.msra.mxu0 %v878
  %923 = vmatprep.subr.mxu0 0.0
  %924 = vmatpush1.msra.mxu0 %v883
  %925 = vmatprep.subr.mxu0 0.0
  %926 = vmatpush1.msra.mxu0 0.0
  %927 = vmatprep.subr.mxu0 0.0
  %928 = vmatpush1.msra.mxu0 0.0
  %929 = vmatprep.subr.mxu0 0.0
  %930 = vmatpush1.msra.mxu0 0.0
  %931 = vmatprep.subr.mxu0 0.0
  %932 = vmatpush1.msra.mxu0 0.0
  %933 = vmatprep.subr.mxu0 0.0
  %934 = vmatpush1.msra.mxu0 0.0
  %935 = vmatprep.subr.mxu0 0.0
  %936 = vmatpush1.msra.mxu0 0.0
  %937 = vmatprep.subr.mxu0 0.0
  %938 = vmatpush1.msra.mxu0 0.0
  %939 = vmatprep.subr.mxu0 0.0
  %940 = vmatpush1.msra.mxu0 0.0
  %941 = vmatprep.subr.mxu0 0.0
  %942 = vmatpush1.msra.mxu0 0.0
  %943 = vmatprep.subr.mxu0 0.0
  %944 = vmatpush1.msra.mxu0 0.0
  %945 = vmatprep.subr.mxu0 0.0
  %946 = vmatpush1.msra.mxu0 0.0
  %947 = vmatprep.subr.mxu0 0.0
  %948 = vmatpush1.msra.mxu0 0.0
  %949 = vmatprep.subr.mxu0 0.0
  %950 = vmatpush1.msra.mxu0 0.0
  %951 = vmatprep.subr.mxu0 0.0
  %952 = vmatpush1.msra.mxu0 0.0
  %953 = vmatprep.subr.mxu0 0.0
  %954 = vmatpush1.msra.mxu0 0.0
  %955 = vmatprep.subr.mxu0 0.0
  %956 = vmatpush1.msra.mxu0 0.0
  %957 = vmatprep.mubr.f32.mxu0 0.0
  %958 = vmatmul.mubr.f32.gmra.mrb[0].mxu0 %v35
  %v959 = vpop.f32.mrb[0].mxu0
  %v960 = vadd.f32 %v891, %v959
  %v961 = vpop.f32.mrb[0].mxu0
  %962 = vmatprep.mubr.f32.mxu0 0.0
  %963 = vmatmul.mubr.f32.gmra.mrb[0].mxu0 %v36
  %v964 = vpop.f32.mrb[0].mxu0
  %v965 = vadd.f32 %v891, %v964
  %v966 = vpop.f32.mrb[0].mxu0
  %967 = vmatprep.mubr.f32.mxu0 0.0
  %968 = vmatmul.mubr.f32.gmra.mrb[0].mxu0 %v37
  %v969 = vpop.f32.mrb[0].mxu0
  %v970 = vadd.f32 %v891, %v969
  %v971 = vpop.f32.mrb[0].mxu0
  %972 = vmatprep.mubr.f32.mxu0 0.0
  %973 = vmatmul.mubr.f32.gmra.mrb[0].mxu0 %v38
  %v974 = vpop.f32.mrb[0].mxu0
  %v975 = vadd.f32 %v891, %v974
  %v976 = vpop.f32.mrb[0].mxu0
  %977 = vmatprep.mubr.f32.mxu0 0.0
  %978 = vmatmul.mubr.f32.gmra.mrb[0].mxu0 %v39
  %v979 = vpop.f32.mrb[0].mxu0
  %v980 = vadd.f32 %v891, %v979
  %v981 = vpop.f32.mrb[0].mxu0
  %982 = vmatprep.mubr.f32.mxu0 0.0
  %983 = vmatmul.mubr.f32.gmra.mrb[0].mxu0 %v40
  %v984 = vpop.f32.mrb[0].mxu0
  %v985 = vadd.f32 %v891, %v984
  %v986 = vpop.f32.mrb[0].mxu0
  %987 = vmatprep.mubr.f32.mxu0 0.0
  %988 = vmatmul.mubr.f32.gmra.mrb[0].mxu0 %v41
  %v989 = vpop.f32.mrb[0].mxu0
  %v990 = vadd.f32 %v891, %v989
  %v991 = vpop.f32.mrb[0].mxu0
  %992 = vmatprep.mubr.f32.mxu0 0.0
  %993 = vmatmul.mubr.f32.gmra.mrb[0].mxu0 %v42
  %v994 = vpop.f32.mrb[0].mxu0
  %v995 = vadd.f32 %v891, %v994
  %v996 = vpop.f32.mrb[0].mxu0
  %997 = vmatprep.mubr.f32.mxu0 0.0
  %998 = vmatmul.mubr.f32.gmra.mrb[0].mxu0 %v43
  %v999 = vpop.f32.mrb[0].mxu0
  %v1000 = vadd.f32 %v891, %v999
  %v1001 = vpop.f32.mrb[0].mxu0
  %1002 = vmatprep.mubr.f32.mxu0 0.0
  %1003 = vmatmul.mubr.f32.gmra.mrb[0].mxu0 %v44
  %v1004 = vpop.f32.mrb[0].mxu0
  %v1005 = vadd.f32 %v891, %v1004
  %v1006 = vpop.f32.mrb[0].mxu0
  %1007 = vmatprep.mubr.f32.mxu0 0.0
  %1008 = vmatmul.mubr.f32.gmra.mrb[0].mxu0 %v45
  %v1009 = vpop.f32.mrb[0].mxu0
  %v1010 = vadd.f32 %v891, %v1009
  %v1011 = vpop.f32.mrb[0].mxu0
  %1012 = vmatprep.mubr.f32.mxu0 0.0
  %1013 = vmatmul.mubr.f32.gmra.mrb[0].mxu0 %v46
  %v1014 = vpop.f32.mrb[0].mxu0
  %v1015 = vadd.f32 %v891, %v1014
  %v1016 = vpop.f32.mrb[0].mxu0
  %1017 = vmatprep.mubr.f32.mxu0 0.0
  %1018 = vmatmul.mubr.f32.gmra.mrb[0].mxu0 %v47
  %v1019 = vpop.f32.mrb[0].mxu0
  %v1020 = vadd.f32 %v891, %v1019
  %v1021 = vpop.f32.mrb[0].mxu0
  %1022 = vmatprep.mubr.f32.mxu0 0.0
  %1023 = vmatmul.mubr.f32.gmra.mrb[0].mxu0 %v48
  %v1024 = vpop.f32.mrb[0].mxu0
  %v1025 = vadd.f32 %v891, %v1024
  %v1026 = vpop.f32.mrb[0].mxu0
  %1027 = vmatprep.mubr.f32.mxu0 0.0
  %1028 = vmatmul.mubr.f32.gmra.mrb[0].mxu0 %v49
  %v1029 = vpop.f32.mrb[0].mxu0
  %v1030 = vadd.f32 %v891, %v1029
  %v1031 = vpop.f32.mrb[0].mxu0
  %1032 = vmatprep.mubr.f32.mxu0 0.0
  %1033 = vmatmul.mubr.f32.gmra.mrb[0].mxu0 %v50
  %v1034 = vpop.f32.mrb[0].mxu0
  %v1035 = vadd.f32 %v891, %v1034
  %v1036 = vpop.f32.mrb[0].mxu0
  %1037 = vdwg.mxu0
  %v1038 = vtanh.pop %v960
  %v1039 = vtanh.pop %v965
  %v1040 = vtanh.pop %v970
  %v1041 = vtanh.pop %v975
  %v1042 = vtanh.pop %v980
  %v1043 = vtanh.pop %v985
  %v1044 = vtanh.pop %v990
  %v1045 = vtanh.pop %v995
  %v1046 = vtanh.pop %v1000
  %v1047 = vtanh.pop %v1005
  %v1048 = vtanh.pop %v1010
  %v1049 = vtanh.pop %v1015
  %v1050 = vtanh.pop %v1020
  %v1051 = vtanh.pop %v1025
  %v1052 = vtanh.pop %v1030
  %v1053 = vtanh.pop %v1035
  %v1054 = vld [vmem:[%s8] sm:$0xff]
  %v1055 = vld [vmem:[%s8 + $0x8] sm:$0xff]
  %v1056 = vld [vmem:[%s8 + $0x10] sm:$0xff]
  %v1057 = vld [vmem:[%s8 + $0x18] sm:$0xff]
  %v1058 = vld [vmem:[%s8 + $0x20] sm:$0xff]
  %v1059 = vld [vmem:[%s8 + $0x28] sm:$0xff]
  %v1060 = vld [vmem:[%s8 + $0x30] sm:$0xff]
  %v1061 = vld [vmem:[%s8 + $0x38] sm:$0xff]
  %v1062 = vld [vmem:[%s8 + $0x40] sm:$0xff]
  %v1063 = vld [vmem:[%s8 + $0x48] sm:$0xff]
  %v1064 = vld [vmem:[%s8 + $0x50] sm:$0xff]
  %v1065 = vld [vmem:[%s8 + $0x58] sm:$0xff]
  %v1066 = vld [vmem:[%s8 + $0x60] sm:$0xff]
  %v1067 = vld [vmem:[%s8 + $0x68] sm:$0xff]
  %v1068 = vld [vmem:[%s8 + $0x70] sm:$0xff]
  %v1069 = vld [vmem:[%s8 + $0x78] sm:$0xff]
  %v1070 = vld [vmem:[%s9] sm:$0x1]
  %v1072 = vlaneseq
  %v1073 = vshrl.u32 %v1072, 7
  %v1074 = vsub.s32 0, %v1073
  %v1075 = vrot.slane %v1070, %v1074
  %1077 = vmatprep.subr.mxu0 0.0
  %1078 = vmatpush1.msra.mxu0 %v1054
  %1079 = vmatprep.subr.mxu0 0.0
  %1080 = vmatpush1.msra.mxu0 %v1055
  %1081 = vmatprep.subr.mxu0 0.0
  %1082 = vmatpush1.msra.mxu0 %v1056
  %1083 = vmatprep.subr.mxu0 0.0
  %1084 = vmatpush1.msra.mxu0 %v1057
  %1085 = vmatprep.subr.mxu0 0.0
  %1086 = vmatpush1.msra.mxu0 %v1058
  %1087 = vmatprep.subr.mxu0 0.0
  %1088 = vmatpush1.msra.mxu0 %v1059
  %1089 = vmatprep.subr.mxu0 0.0
  %1090 = vmatpush1.msra.mxu0 %v1060
  %1091 = vmatprep.subr.mxu0 0.0
  %1092 = vmatpush1.msra.mxu0 %v1061
  %1093 = vmatprep.subr.mxu0 0.0
  %1094 = vmatpush1.msra.mxu0 %v1062
  %1095 = vmatprep.subr.mxu0 0.0
  %1096 = vmatpush1.msra.mxu0 %v1063
  %1097 = vmatprep.subr.mxu0 0.0
  %1098 = vmatpush1.msra.mxu0 %v1064
  %1099 = vmatprep.subr.mxu0 0.0
  %1100 = vmatpush1.msra.mxu0 %v1065
  %1101 = vmatprep.subr.mxu0 0.0
  %1102 = vmatpush1.msra.mxu0 %v1066
  %1103 = vmatprep.subr.mxu0 0.0
  %1104 = vmatpush1.msra.mxu0 %v1067
  %1105 = vmatprep.subr.mxu0 0.0
  %1106 = vmatpush1.msra.mxu0 %v1068
  %1107 = vmatprep.subr.mxu0 0.0
  %1108 = vmatpush1.msra.mxu0 %v1069
  %1109 = vmatprep.subr.mxu0 0.0
  %1110 = vmatpush1.msra.mxu0 0.0
  %1111 = vmatprep.subr.mxu0 0.0
  %1112 = vmatpush1.msra.mxu0 0.0
  %1113 = vmatprep.subr.mxu0 0.0
  %1114 = vmatpush1.msra.mxu0 0.0
  %1115 = vmatprep.subr.mxu0 0.0
  %1116 = vmatpush1.msra.mxu0 0.0
  %1117 = vmatprep.subr.mxu0 0.0
  %1118 = vmatpush1.msra.mxu0 0.0
  %1119 = vmatprep.subr.mxu0 0.0
  %1120 = vmatpush1.msra.mxu0 0.0
  %1121 = vmatprep.subr.mxu0 0.0
  %1122 = vmatpush1.msra.mxu0 0.0
  %1123 = vmatprep.subr.mxu0 0.0
  %1124 = vmatpush1.msra.mxu0 0.0
  %1125 = vmatprep.subr.mxu0 0.0
  %1126 = vmatpush1.msra.mxu0 0.0
  %1127 = vmatprep.subr.mxu0 0.0
  %1128 = vmatpush1.msra.mxu0 0.0
  %1129 = vmatprep.subr.mxu0 0.0
  %1130 = vmatpush1.msra.mxu0 0.0
  %1131 = vmatprep.subr.mxu0 0.0
  %1132 = vmatpush1.msra.mxu0 0.0
  %1133 = vmatprep.subr.mxu0 0.0
  %1134 = vmatpush1.msra.mxu0 0.0
  %1135 = vmatprep.subr.mxu0 0.0
  %1136 = vmatpush1.msra.mxu0 0.0
  %1137 = vmatprep.subr.mxu0 0.0
  %1138 = vmatpush1.msra.mxu0 0.0
  %1139 = vmatprep.subr.mxu0 0.0
  %1140 = vmatpush1.msra.mxu0 0.0
  %1141 = vmatprep.mubr.f32.mxu0 0.0
  %1142 = vmatmul.mubr.f32.gmra.mrb[0].mxu0 %v1038
  %v1143 = vpop.f32.mrb[0].mxu0
  %v1144 = vadd.f32 %v1075, %v1143
  %v1145 = vpop.f32.mrb[0].mxu0
  %1146 = vmatprep.mubr.f32.mxu0 0.0
  %1147 = vmatmul.mubr.f32.gmra.mrb[0].mxu0 %v1039
  %v1148 = vpop.f32.mrb[0].mxu0
  %v1149 = vadd.f32 %v1075, %v1148
  %v1150 = vpop.f32.mrb[0].mxu0
  %1151 = vmatprep.mubr.f32.mxu0 0.0
  %1152 = vmatmul.mubr.f32.gmra.mrb[0].mxu0 %v1040
  %v1153 = vpop.f32.mrb[0].mxu0
  %v1154 = vadd.f32 %v1075, %v1153
  %v1155 = vpop.f32.mrb[0].mxu0
  %1156 = vmatprep.mubr.f32.mxu0 0.0
  %1157 = vmatmul.mubr.f32.gmra.mrb[0].mxu0 %v1041
  %v1158 = vpop.f32.mrb[0].mxu0
  %v1159 = vadd.f32 %v1075, %v1158
  %v1160 = vpop.f32.mrb[0].mxu0
  %1161 = vmatprep.mubr.f32.mxu0 0.0
  %1162 = vmatmul.mubr.f32.gmra.mrb[0].mxu0 %v1042
  %v1163 = vpop.f32.mrb[0].mxu0
  %v1164 = vadd.f32 %v1075, %v1163
  %v1165 = vpop.f32.mrb[0].mxu0
  %1166 = vmatprep.mubr.f32.mxu0 0.0
  %1167 = vmatmul.mubr.f32.gmra.mrb[0].mxu0 %v1043
  %v1168 = vpop.f32.mrb[0].mxu0
  %v1169 = vadd.f32 %v1075, %v1168
  %v1170 = vpop.f32.mrb[0].mxu0
  %1171 = vmatprep.mubr.f32.mxu0 0.0
  %1172 = vmatmul.mubr.f32.gmra.mrb[0].mxu0 %v1044
  %v1173 = vpop.f32.mrb[0].mxu0
  %v1174 = vadd.f32 %v1075, %v1173
  %v1175 = vpop.f32.mrb[0].mxu0
  %1176 = vmatprep.mubr.f32.mxu0 0.0
  %1177 = vmatmul.mubr.f32.gmra.mrb[0].mxu0 %v1045
  %v1178 = vpop.f32.mrb[0].mxu0
  %v1179 = vadd.f32 %v1075, %v1178
  %v1180 = vpop.f32.mrb[0].mxu0
  %1181 = vmatprep.mubr.f32.mxu0 0.0
  %1182 = vmatmul.mubr.f32.gmra.mrb[0].mxu0 %v1046
  %v1183 = vpop.f32.mrb[0].mxu0
  %v1184 = vadd.f32 %v1075, %v1183
  %v1185 = vpop.f32.mrb[0].mxu0
  %1186 = vmatprep.mubr.f32.mxu0 0.0
  %1187 = vmatmul.mubr.f32.gmra.mrb[0].mxu0 %v1047
  %v1188 = vpop.f32.mrb[0].mxu0
  %v1189 = vadd.f32 %v1075, %v1188
  %v1190 = vpop.f32.mrb[0].mxu0
  %1191 = vmatprep.mubr.f32.mxu0 0.0
  %1192 = vmatmul.mubr.f32.gmra.mrb[0].mxu0 %v1048
  %v1193 = vpop.f32.mrb[0].mxu0
  %v1194 = vadd.f32 %v1075, %v1193
  %v1195 = vpop.f32.mrb[0].mxu0
  %1196 = vmatprep.mubr.f32.mxu0 0.0
  %1197 = vmatmul.mubr.f32.gmra.mrb[0].mxu0 %v1049
  %v1198 = vpop.f32.mrb[0].mxu0
  %v1199 = vadd.f32 %v1075, %v1198
  %v1200 = vpop.f32.mrb[0].mxu0
  %1201 = vmatprep.mubr.f32.mxu0 0.0
  %1202 = vmatmul.mubr.f32.gmra.mrb[0].mxu0 %v1050
  %v1203 = vpop.f32.mrb[0].mxu0
  %v1204 = vadd.f32 %v1075, %v1203
  %v1205 = vpop.f32.mrb[0].mxu0
  %1206 = vmatprep.mubr.f32.mxu0 0.0
  %1207 = vmatmul.mubr.f32.gmra.mrb[0].mxu0 %v1051
  %v1208 = vpop.f32.mrb[0].mxu0
  %v1209 = vadd.f32 %v1075, %v1208
  %v1210 = vpop.f32.mrb[0].mxu0
  %1211 = vmatprep.mubr.f32.mxu0 0.0
  %1212 = vmatmul.mubr.f32.gmra.mrb[0].mxu0 %v1052
  %v1213 = vpop.f32.mrb[0].mxu0
  %v1214 = vadd.f32 %v1075, %v1213
  %v1215 = vpop.f32.mrb[0].mxu0
  %1216 = vmatprep.mubr.f32.mxu0 0.0
  %1217 = vmatmul.mubr.f32.gmra.mrb[0].mxu0 %v1053
  %v1218 = vpop.f32.mrb[0].mxu0
  %v1219 = vadd.f32 %v1075, %v1218
  %v1220 = vpop.f32.mrb[0].mxu0
  %1221 = vdwg.mxu0
  %1222 = vst [vmem:[%s10] sm:$0xff] %v1144
  %1223 = vst [vmem:[%s10 + $0x8] sm:$0xff] %v1149
  %1224 = vst [vmem:[%s10 + $0x10] sm:$0xff] %v1154
  %1225 = vst [vmem:[%s10 + $0x18] sm:$0xff] %v1159
  %1226 = vst [vmem:[%s10 + $0x20] sm:$0xff] %v1164
  %1227 = vst [vmem:[%s10 + $0x28] sm:$0xff] %v1169
  %1228 = vst [vmem:[%s10 + $0x30] sm:$0xff] %v1174
  %1229 = vst [vmem:[%s10 + $0x38] sm:$0xff] %v1179
  %1230 = vst [vmem:[%s10 + $0x40] sm:$0xff] %v1184
  %1231 = vst [vmem:[%s10 + $0x48] sm:$0xff] %v1189
  %1232 = vst [vmem:[%s10 + $0x50] sm:$0xff] %v1194
  %1233 = vst [vmem:[%s10 + $0x58] sm:$0xff] %v1199
  %1234 = vst [vmem:[%s10 + $0x60] sm:$0xff] %v1204
  %1235 = vst [vmem:[%s10 + $0x68] sm:$0xff] %v1209
  %1236 = vst [vmem:[%s10 + $0x70] sm:$0xff] %v1214
  %1237 = vst [vmem:[%s10 + $0x78] sm:$0xff] %v1219
  // Predicated region
  $region42: #{gcn_forward.1} parent=0 // pred_check
    _
  $region43: #{gcn_forward.1} parent=0 // pred_check_branch
    %1239 = sbr.rel (0) target = $region45
  $region44: #{gcn_forward.1} parent=0 // pred_region
    _
  $region45: #{gcn_forward.1} parent=0 // pred_fallthru
    _
  // Predicated region
  $region46: #{gcn_forward.1} parent=0 // pred_check
    _
  $region47: #{gcn_forward.1} parent=0 // pred_check_branch
    %1241 = sbr.rel (0) target = $region49
  $region48: #{gcn_forward.1} parent=0 // pred_region
    _
  $region49: #{gcn_forward.1} parent=0 // pred_fallthru
    _

</llo_original>
